<compile_context>
chip_gen: v5e
topology: v5e:2x2
jax: 0.10.0
libtpu: 0.0.40
codegen_flags: <defaults>
</compile_context>

<pallas_src>
import functools

import jax
import jax.numpy as jnp
from jax.experimental import pallas as pl
from jax.experimental.pallas import tpu as pltpu


def _attention_kernel(he_ref, mask_ref, ce_ref,
                      wq_ref, wk_ref, wv_ref,
                      bq_ref, bk_ref, bv_ref,
                      out_ref):
    """One batch-tile of target-aware attention, fully fused in VMEM."""
    bb, S, di = he_ref.shape
    do = wq_ref.shape[1]

    # ---- Q / K / V projections on the MXU (f32 accumulation) ----
    he = he_ref[...].reshape(bb * S, di)                       # [bb*S, Di]
    q = jnp.dot(ce_ref[...], wq_ref[...],
                preferred_element_type=jnp.float32) + bq_ref[...]   # [bb, Do]
    k = jnp.dot(he, wk_ref[...],
                preferred_element_type=jnp.float32) + bk_ref[...]   # [bb*S, Do]
    v = jnp.dot(he, wv_ref[...],
                preferred_element_type=jnp.float32) + bv_ref[...]   # [bb*S, Do]
    k = k.reshape(bb, S, do)
    v = v.reshape(bb, S, do)

    # ---- target-aware logits + mask (exact PyTorch formula) ----
    logits = jnp.sum(q[:, None, :] * k, axis=2)                # [bb, S]
    mask = mask_ref[...].astype(jnp.float32)
    logits = logits * mask + logits * (1.0 - mask) * (-2.0 ** 32)

    # ---- stable softmax over the sequence axis ----
    m = jnp.max(logits, axis=1, keepdims=True)
    e = jnp.exp(logits - m)
    scores = e / jnp.sum(e, axis=1, keepdims=True)             # [bb, S]

    # ---- weighted aggregation of V ----
    out = jnp.sum(scores[:, :, None] * v, axis=1)              # [bb, Do]
    out_ref[...] = out.astype(out_ref.dtype)


def attention_forward(hist_seq_emb, hist_seq_mask, cand_emb,
                      wq, bq, wk, bk, wv, bv, *, block_b=8):
    """Pallas equivalent of Attention.forward (weights stored as [Di, Do])."""
    B, S, di = hist_seq_emb.shape
    do = wq.shape[1]

    # Pad batch up to a multiple of block_b (sublane-friendly tiles); padded
    # rows are zeros, produce finite garbage, and are sliced off below.
    n_blocks = pl.cdiv(B, block_b)
    B_pad = n_blocks * block_b
    if B_pad != B:
        pad = B_pad - B
        hist_seq_emb = jnp.pad(hist_seq_emb, ((0, pad), (0, 0), (0, 0)))
        hist_seq_mask = jnp.pad(hist_seq_mask, ((0, pad), (0, 0)))
        cand_emb = jnp.pad(cand_emb, ((0, pad), (0, 0)))

    out = pl.pallas_call(
        _attention_kernel,
        out_shape=jax.ShapeDtypeStruct((B_pad, do), cand_emb.dtype),
        grid_spec=pltpu.PrefetchScalarGridSpec(
            num_scalar_prefetch=0,
            grid=(n_blocks,),
            in_specs=[
                pl.BlockSpec((block_b, S, di), lambda i: (i, 0, 0)),  # hist emb
                pl.BlockSpec((block_b, S), lambda i: (i, 0)),         # mask
                pl.BlockSpec((block_b, di), lambda i: (i, 0)),        # cand emb
                pl.BlockSpec((di, do), lambda i: (0, 0)),             # Wq
                pl.BlockSpec((di, do), lambda i: (0, 0)),             # Wk
                pl.BlockSpec((di, do), lambda i: (0, 0)),             # Wv
                pl.BlockSpec((1, do), lambda i: (0, 0)),              # bq
                pl.BlockSpec((1, do), lambda i: (0, 0)),              # bk
                pl.BlockSpec((1, do), lambda i: (0, 0)),              # bv
            ],
            out_specs=pl.BlockSpec((block_b, do), lambda i: (i, 0)),
        ),
        compiler_params=pltpu.CompilerParams(
            dimension_semantics=("parallel",),   # batch tiles -> megacore
        ),
    )(hist_seq_emb, hist_seq_mask, cand_emb, wq, wk, wv, bq, bk, bv)

    return out[:B]


def attention_ref(hist_seq_emb, hist_seq_mask, cand_emb,
                  wq, bq, wk, bk, wv, bv):
    """Pure-JAX reference mirroring the PyTorch forward exactly."""
    q = cand_emb @ wq + bq                                     # [B, Do]
    k = hist_seq_emb @ wk + bk                                 # [B, S, Do]
    v = hist_seq_emb @ wv + bv                                 # [B, S, Do]
    logits = jnp.sum(q[:, None, :] * k, axis=2)                # [B, S]
    logits = logits * hist_seq_mask + logits * (1.0 - hist_seq_mask) * (-2.0 ** 32)
    scores = jax.nn.softmax(logits, axis=1)
    return jnp.sum(scores[:, :, None] * v, axis=1)             # [B, Do]


def init_linear(key, dim_i, dim_o, dtype=jnp.float32):
    """Mimic nn.Linear init: U(-1/sqrt(dim_i), 1/sqrt(dim_i)) for W and b.
    Weight stored as [dim_i, dim_o] (already transposed for x @ W)."""
    kw, kb = jax.random.split(key)
    bound = 1.0 / (dim_i ** 0.5)
    w = jax.random.uniform(kw, (dim_i, dim_o), dtype, -bound, bound)
    b = jax.random.uniform(kb, (1, dim_o), dtype, -bound, bound)
    return w, b


if __name__ == "__main__":
    key = jax.random.PRNGKey(0)
    k_q, k_k, k_v, k_he, k_ce, k_m = jax.random.split(key, 6)

    batch, seq, dim_i, dim_o = 2, 8, 32, 32

    wq, bq = init_linear(k_q, dim_i, dim_o)
    wk, bk = init_linear(k_k, dim_i, dim_o)
    wv, bv = init_linear(k_v, dim_i, dim_o)

    hist_seq_emb = jax.random.normal(k_he, (batch, seq, dim_i), jnp.float32)
    cand_emb = jax.random.normal(k_ce, (batch, dim_i), jnp.float32)
    hist_seq_mask = jax.random.bernoulli(k_m, 0.7, (batch, seq)).astype(jnp.float32)
    hist_seq_mask = hist_seq_mask.at[:, 0].set(1.0)   # each row has >=1 valid step

    out = attention_forward(hist_seq_emb, hist_seq_mask, cand_emb,
                            wq, bq, wk, bk, wv, bv)
    out = jax.block_until_ready(out)

    ref = attention_ref(hist_seq_emb, hist_seq_mask, cand_emb,
                        wq, bq, wk, bk, wv, bv)

    assert out.shape == (batch, dim_o), f"bad output shape {out.shape}"
    assert jnp.allclose(out, ref, rtol=1e-5, atol=1e-5), "Pallas attention mismatch"

    print("KERNEL_OK")
</pallas_src>

<mosaic_0001>
module attributes {stable_mosaic.version = 11 : i64} {
  func.func @_attention_kernel(%arg0: i32, %arg1: memref<8x8x32xf32, #tpu.memory_space<vmem>>, %arg2: memref<8x8xf32, #tpu.memory_space<vmem>>, %arg3: memref<8x32xf32, #tpu.memory_space<vmem>>, %arg4: memref<32x32xf32, #tpu.memory_space<vmem>>, %arg5: memref<32x32xf32, #tpu.memory_space<vmem>>, %arg6: memref<32x32xf32, #tpu.memory_space<vmem>>, %arg7: memref<1x32xf32, #tpu.memory_space<vmem>>, %arg8: memref<1x32xf32, #tpu.memory_space<vmem>>, %arg9: memref<1x32xf32, #tpu.memory_space<vmem>>, %arg10: memref<8x32xf32, #tpu.memory_space<vmem>>) attributes {dimension_semantics = [#tpu.dimension_semantics<parallel>], iteration_bounds = array<i64: 1>, scalar_prefetch = 0 : i64, scratch_operands = 0 : i64, tpu.core_type = #tpu.core_type<tc>, window_params = [{transform_indices = @transform_0, window_bounds = array<i64: 8, 8, 32>}, {transform_indices = @transform_1, window_bounds = array<i64: 8, 8>}, {transform_indices = @transform_2, window_bounds = array<i64: 8, 32>}, {pipeline_mode = #tpu.pipeline_mode<synchronous>, transform_indices = @transform_3, window_bounds = array<i64: 32, 32>}, {pipeline_mode = #tpu.pipeline_mode<synchronous>, transform_indices = @transform_4, window_bounds = array<i64: 32, 32>}, {pipeline_mode = #tpu.pipeline_mode<synchronous>, transform_indices = @transform_5, window_bounds = array<i64: 32, 32>}, {pipeline_mode = #tpu.pipeline_mode<synchronous>, transform_indices = @transform_6, window_bounds = array<i64: 1, 32>}, {pipeline_mode = #tpu.pipeline_mode<synchronous>, transform_indices = @transform_7, window_bounds = array<i64: 1, 32>}, {pipeline_mode = #tpu.pipeline_mode<synchronous>, transform_indices = @transform_8, window_bounds = array<i64: 1, 32>}, {transform_indices = @transform_9, window_bounds = array<i64: 8, 32>}]} {
    %c0 = arith.constant 0 : index
    %c0_0 = arith.constant 0 : index
    %c0_1 = arith.constant 0 : index
    %0 = vector.load %arg1[%c0, %c0_0, %c0_1] : memref<8x8x32xf32, #tpu.memory_space<vmem>>, vector<8x8x32xf32>
    %1 = vector.shape_cast %0 : vector<8x8x32xf32> to vector<64x32xf32>
    %c0_2 = arith.constant 0 : index
    %c0_3 = arith.constant 0 : index
    %2 = vector.load %arg3[%c0_2, %c0_3] : memref<8x32xf32, #tpu.memory_space<vmem>>, vector<8x32xf32>
    %c0_4 = arith.constant 0 : index
    %c0_5 = arith.constant 0 : index
    %3 = vector.load %arg4[%c0_4, %c0_5] : memref<32x32xf32, #tpu.memory_space<vmem>>, vector<32x32xf32>
    %cst = arith.constant dense<0.000000e+00> : vector<8x32xf32>
    %4 = tpu.matmul %2, %3, %cst {dimension_numbers = #tpu.dot_dimension_numbers<[1], [0], [0], [1], [0, 0, 1, 1], [], []>} : vector<8x32xf32>, vector<32x32xf32>, vector<8x32xf32> -> vector<8x32xf32>
    %c0_6 = arith.constant 0 : index
    %c0_7 = arith.constant 0 : index
    %5 = vector.load %arg7[%c0_6, %c0_7] : memref<1x32xf32, #tpu.memory_space<vmem>>, vector<1x32xf32>
    %6 = vector.broadcast %5 : vector<1x32xf32> to vector<8x32xf32>
    %7 = arith.addf %4, %6 : vector<8x32xf32>
    %c0_8 = arith.constant 0 : index
    %c0_9 = arith.constant 0 : index
    %8 = vector.load %arg5[%c0_8, %c0_9] : memref<32x32xf32, #tpu.memory_space<vmem>>, vector<32x32xf32>
    %cst_10 = arith.constant dense<0.000000e+00> : vector<64x32xf32>
    %9 = tpu.matmul %1, %8, %cst_10 {dimension_numbers = #tpu.dot_dimension_numbers<[1], [0], [0], [1], [0, 0, 1, 1], [], []>} : vector<64x32xf32>, vector<32x32xf32>, vector<64x32xf32> -> vector<64x32xf32>
    %c0_11 = arith.constant 0 : index
    %c0_12 = arith.constant 0 : index
    %10 = vector.load %arg8[%c0_11, %c0_12] : memref<1x32xf32, #tpu.memory_space<vmem>>, vector<1x32xf32>
    %11 = vector.broadcast %10 : vector<1x32xf32> to vector<64x32xf32>
    %12 = arith.addf %9, %11 : vector<64x32xf32>
    %c0_13 = arith.constant 0 : index
    %c0_14 = arith.constant 0 : index
    %13 = vector.load %arg6[%c0_13, %c0_14] : memref<32x32xf32, #tpu.memory_space<vmem>>, vector<32x32xf32>
    %cst_15 = arith.constant dense<0.000000e+00> : vector<64x32xf32>
    %14 = tpu.matmul %1, %13, %cst_15 {dimension_numbers = #tpu.dot_dimension_numbers<[1], [0], [0], [1], [0, 0, 1, 1], [], []>} : vector<64x32xf32>, vector<32x32xf32>, vector<64x32xf32> -> vector<64x32xf32>
    %c0_16 = arith.constant 0 : index
    %c0_17 = arith.constant 0 : index
    %15 = vector.load %arg9[%c0_16, %c0_17] : memref<1x32xf32, #tpu.memory_space<vmem>>, vector<1x32xf32>
    %16 = vector.broadcast %15 : vector<1x32xf32> to vector<64x32xf32>
    %17 = arith.addf %14, %16 : vector<64x32xf32>
    %18 = vector.shape_cast %12 : vector<64x32xf32> to vector<8x8x32xf32>
    %19 = vector.shape_cast %17 : vector<64x32xf32> to vector<8x8x32xf32>
    %20 = vector.shape_cast %7 : vector<8x32xf32> to vector<8x1x32xf32>
    %21 = vector.broadcast %20 : vector<8x1x32xf32> to vector<8x8x32xf32>
    %22 = arith.mulf %21, %18 : vector<8x8x32xf32>
    %cst_18 = arith.constant dense<0.000000e+00> : vector<8x8xf32>
    %23 = vector.multi_reduction <add>, %22, %cst_18 [2] : vector<8x8x32xf32> to vector<8x8xf32>
    %c0_19 = arith.constant 0 : index
    %c0_20 = arith.constant 0 : index
    %24 = vector.load %arg2[%c0_19, %c0_20] : memref<8x8xf32, #tpu.memory_space<vmem>>, vector<8x8xf32>
    %25 = arith.mulf %23, %24 : vector<8x8xf32>
    %cst_21 = arith.constant 1.000000e+00 : f32
    %26 = vector.broadcast %cst_21 : f32 to vector<8x8xf32>
    %27 = arith.subf %26, %24 : vector<8x8xf32>
    %28 = arith.mulf %23, %27 : vector<8x8xf32>
    %cst_22 = arith.constant -4.2949673E+9 : f32
    %29 = vector.broadcast %cst_22 : f32 to vector<8x8xf32>
    %30 = arith.mulf %28, %29 : vector<8x8xf32>
    %31 = arith.addf %25, %30 : vector<8x8xf32>
    %cst_23 = arith.constant dense<0xFF800000> : vector<8xf32>
    %32 = vector.multi_reduction <maximumf>, %31, %cst_23 [1] : vector<8x8xf32> to vector<8xf32>
    %33 = vector.shape_cast %32 : vector<8xf32> to vector<8x1xf32>
    %34 = vector.broadcast %33 : vector<8x1xf32> to vector<8x8xf32>
    %35 = arith.subf %31, %34 : vector<8x8xf32>
    %36 = math.exp %35 : vector<8x8xf32>
    %cst_24 = arith.constant dense<0.000000e+00> : vector<8xf32>
    %37 = vector.multi_reduction <add>, %36, %cst_24 [1] : vector<8x8xf32> to vector<8xf32>
    %38 = vector.shape_cast %37 : vector<8xf32> to vector<8x1xf32>
    %39 = vector.broadcast %38 : vector<8x1xf32> to vector<8x8xf32>
    %40 = arith.divf %36, %39 : vector<8x8xf32>
    %41 = vector.shape_cast %40 : vector<8x8xf32> to vector<8x8x1xf32>
    %42 = vector.broadcast %41 : vector<8x8x1xf32> to vector<8x8x32xf32>
    %43 = arith.mulf %42, %19 : vector<8x8x32xf32>
    %cst_25 = arith.constant dense<0.000000e+00> : vector<8x32xf32>
    %44 = vector.multi_reduction <add>, %43, %cst_25 [1] : vector<8x8x32xf32> to vector<8x32xf32>
    %c0_26 = arith.constant 0 : index
    %c0_27 = arith.constant 0 : index
    %45 = vector.load %arg10[%c0_26, %c0_27] : memref<8x32xf32, #tpu.memory_space<vmem>>, vector<8x32xf32>
    tpu.vector_store %arg10[%c0_26, %c0_27], %44 {strides = array<i32>} : memref<8x32xf32, #tpu.memory_space<vmem>>, vector<8x32xf32>,
    return
  }
  func.func @transform_0(%arg0: i32) -> (i32, i32, i32) {
    %c0_i32 = arith.constant 0 : i32
    %c0_i32_0 = arith.constant 0 : i32
    %c0_i32_1 = arith.constant 0 : i32
    return %arg0, %c0_i32, %c0_i32_0 : i32, i32, i32
  }
  func.func @transform_1(%arg0: i32) -> (i32, i32) {
    %c0_i32 = arith.constant 0 : i32
    %c0_i32_0 = arith.constant 0 : i32
    return %arg0, %c0_i32 : i32, i32
  }
  func.func @transform_2(%arg0: i32) -> (i32, i32) {
    %c0_i32 = arith.constant 0 : i32
    %c0_i32_0 = arith.constant 0 : i32
    return %arg0, %c0_i32 : i32, i32
  }
  func.func @transform_3(%arg0: i32) -> (i32, i32) {
    %c0_i32 = arith.constant 0 : i32
    %c0_i32_0 = arith.constant 0 : i32
    %c0_i32_1 = arith.constant 0 : i32
    return %c0_i32, %c0_i32_0 : i32, i32
  }
  func.func @transform_4(%arg0: i32) -> (i32, i32) {
    %c0_i32 = arith.constant 0 : i32
    %c0_i32_0 = arith.constant 0 : i32
    %c0_i32_1 = arith.constant 0 : i32
    return %c0_i32, %c0_i32_0 : i32, i32
  }
  func.func @transform_5(%arg0: i32) -> (i32, i32) {
    %c0_i32 = arith.constant 0 : i32
    %c0_i32_0 = arith.constant 0 : i32
    %c0_i32_1 = arith.constant 0 : i32
    return %c0_i32, %c0_i32_0 : i32, i32
  }
  func.func @transform_6(%arg0: i32) -> (i32, i32) {
    %c0_i32 = arith.constant 0 : i32
    %c0_i32_0 = arith.constant 0 : i32
    %c0_i32_1 = arith.constant 0 : i32
    return %c0_i32, %c0_i32_0 : i32, i32
  }
  func.func @transform_7(%arg0: i32) -> (i32, i32) {
    %c0_i32 = arith.constant 0 : i32
    %c0_i32_0 = arith.constant 0 : i32
    %c0_i32_1 = arith.constant 0 : i32
    return %c0_i32, %c0_i32_0 : i32, i32
  }
  func.func @transform_8(%arg0: i32) -> (i32, i32) {
    %c0_i32 = arith.constant 0 : i32
    %c0_i32_0 = arith.constant 0 : i32
    %c0_i32_1 = arith.constant 0 : i32
    return %c0_i32, %c0_i32_0 : i32, i32
  }
  func.func @transform_9(%arg0: i32) -> (i32, i32) {
    %c0_i32 = arith.constant 0 : i32
    %c0_i32_0 = arith.constant 0 : i32
    return %arg0, %c0_i32 : i32, i32
  }
}

</mosaic_0001>

<llo_original>
// kernel: tpu_custom_call.1
$region0: #{tpu_custom_call.1}
  #allocation0 [shape = 'u32[]', space=smem, size = 0x4, offset = 0x4, fixed_abs, tag = 'smem constant byte address 0x4 - core index']
  #allocation1 [shape = 'u32[72,128]{1,0:T(1,128)}', space=vmem, size = 0x9000, scoped, tag = 'internal scratch']
  %s0 = inlined_call_operand.hbm [shape: f32[8,8,32], index: 0, kind: input, shape index: {}]
  %s1 = inlined_call_operand.hbm [shape: f32[8,8], index: 1, kind: input, shape index: {}]
  %s2 = inlined_call_operand.hbm [shape: f32[8,32], index: 2, kind: input, shape index: {}]
  %s3 = inlined_call_operand.hbm [shape: f32[32,32], index: 3, kind: input, shape index: {}]
  %s4 = inlined_call_operand.hbm [shape: f32[32,32], index: 4, kind: input, shape index: {}]
  %s5 = inlined_call_operand.hbm [shape: f32[32,32], index: 5, kind: input, shape index: {}]
  %s6 = inlined_call_operand.vmem [shape: f32[1,32], index: 6, kind: input, shape index: {}]
  %s7 = inlined_call_operand.vmem [shape: f32[1,32], index: 7, kind: input, shape index: {}]
  %s8 = inlined_call_operand.vmem [shape: f32[1,32], index: 8, kind: input, shape index: {}]
  %s9 = inlined_call_operand.hbm [shape: f32[8,32], index: 9, kind: output, shape index: {}]
  %s10 = sld [smem:[#allocation0]]
  $region70: #{tpu_custom_call.1} parent=0
    _
  %s12 = ssub.s32 1, %s10
  %s13 = scalar_select 0, %s12, %s10
  $region1: #{tpu_custom_call.1} parent=0
    #allocation2 [shape = 'u8[32768]{0}', space=vmem, size = 0x8000, scoped, tag = 'input window, operand 0, single buffered']
    #allocation3 [shape = 's32[1]{0}', space=sflag, size = 0x4, scoped, tag = 'scoped memory for tpu_custom_call.1']
    #allocation4 [shape = 's32[1]{0}', space=sflag, size = 0x4, scoped, tag = 'scoped memory for tpu_custom_call.1']
    #allocation5 [shape = 'u8[4096]{0}', space=vmem, size = 0x1000, scoped, tag = 'input window, operand 1, single buffered']
    #allocation6 [shape = 's32[1]{0}', space=sflag, size = 0x4, scoped, tag = 'scoped memory for tpu_custom_call.1']
    #allocation7 [shape = 'u8[4096]{0}', space=vmem, size = 0x1000, scoped, tag = 'input window, operand 2, single buffered']
    #allocation8 [shape = 'u8[16384]{0}', space=vmem, size = 0x4000, scoped, tag = 'input window, operand 3, single buffered']
    #allocation9 [shape = 's32[1]{0}', space=sflag, size = 0x4, scoped, tag = 'scoped memory for tpu_custom_call.1']
    #allocation10 [shape = 'u8[16384]{0}', space=vmem, size = 0x4000, scoped, tag = 'input window, operand 4, single buffered']
    #allocation11 [shape = 'u8[16384]{0}', space=vmem, size = 0x4000, scoped, tag = 'input window, operand 5, single buffered']
    #allocation12 [shape = 's32[1]{0}', space=sflag, size = 0x4, scoped, tag = 'scoped memory for tpu_custom_call.1']
    #allocation13 [shape = 'u8[4096]{0}', space=vmem, size = 0x1000, scoped, tag = 'output window, operand 0, single buffered']
    %14 = vsyncpa [#allocation3], 0
    %15 = vsyncpa [#allocation6], 0
    %16 = vsyncpa [#allocation9], 0
    %17 = vsyncpa [#allocation12], 0
    %18 = vsyncpa [#allocation4], 0
    // Predicated region
    $region2: #{tpu_custom_call.1} parent=1 // pred_check
      _
    $region3: #{tpu_custom_call.1} parent=1 // pred_check_branch
      %20 = sbr.rel (0) target = $region5
    $region4: #{tpu_custom_call.1} parent=1 // pred_region
      %22 = vsyncadd [#allocation3], 0
      %s23 = sshll.u32 %s0, 4
      %s24 = int_to_ptr.hbm [resolvable:$true] %s23
      %s25 = sshll.u32 [#allocation2], 4
      %s26 = int_to_ptr.vmem [resolvable:$true] %s25
      %31 = dma.hbm_to_vmem [thread:$0]  %s24, 1024, %s26, [#allocation3], 128, 128, 8
    $region5: #{tpu_custom_call.1} parent=1 // pred_fallthru
      _
    // Predicated region
    $region6: #{tpu_custom_call.1} parent=1 // pred_check
      _
    $region7: #{tpu_custom_call.1} parent=1 // pred_check_branch
      %33 = sbr.rel (0) target = $region9
    $region8: #{tpu_custom_call.1} parent=1 // pred_region
      %35 = vsyncadd [#allocation6], 0
      %s37 = sshll.u32 %s1, 4
      %s38 = int_to_ptr.hbm [resolvable:$true] %s37
      %s39 = sshll.u32 [#allocation5], 4
      %s40 = int_to_ptr.vmem [resolvable:$true] %s39
      %42 = dma.hbm_to_vmem [thread:$0]  %s38, 128, %s40, [#allocation6]
    $region9: #{tpu_custom_call.1} parent=1 // pred_fallthru
      _
    // Predicated region
    $region10: #{tpu_custom_call.1} parent=1 // pred_check
      _
    $region11: #{tpu_custom_call.1} parent=1 // pred_check_branch
      %44 = sbr.rel (0) target = $region13
    $region12: #{tpu_custom_call.1} parent=1 // pred_region
      %46 = vsyncadd [#allocation6], 0
      %s48 = sshll.u32 %s2, 4
      %s49 = int_to_ptr.hbm [resolvable:$true] %s48
      %s50 = sshll.u32 [#allocation7], 4
      %s51 = int_to_ptr.vmem [resolvable:$true] %s50
      %53 = dma.hbm_to_vmem [thread:$0]  %s49, 128, %s51, [#allocation6]
    $region13: #{tpu_custom_call.1} parent=1 // pred_fallthru
      _
    // Predicated region
    $region14: #{tpu_custom_call.1} parent=1 // pred_check
      _
    $region15: #{tpu_custom_call.1} parent=1 // pred_check_branch
      %55 = sbr.rel (0) target = $region17
    $region16: #{tpu_custom_call.1} parent=1 // pred_region
      %57 = vsyncadd [#allocation9], 0
      %s58 = sshll.u32 %s3, 4
      %s59 = int_to_ptr.hbm [resolvable:$true] %s58
      %s60 = sshll.u32 [#allocation8], 4
      %s61 = int_to_ptr.vmem [resolvable:$true] %s60
      %66 = dma.hbm_to_vmem [thread:$0]  %s59, 512, %s61, [#allocation9], 128, 128, 8
    $region17: #{tpu_custom_call.1} parent=1 // pred_fallthru
      _
    // Predicated region
    $region18: #{tpu_custom_call.1} parent=1 // pred_check
      _
    $region19: #{tpu_custom_call.1} parent=1 // pred_check_branch
      %68 = sbr.rel (0) target = $region21
    $region20: #{tpu_custom_call.1} parent=1 // pred_region
      %70 = vsyncadd [#allocation9], 0
      %s71 = sshll.u32 %s4, 4
      %s72 = int_to_ptr.hbm [resolvable:$true] %s71
      %s73 = sshll.u32 [#allocation10], 4
      %s74 = int_to_ptr.vmem [resolvable:$true] %s73
      %79 = dma.hbm_to_vmem [thread:$0]  %s72, 512, %s74, [#allocation9], 128, 128, 8
    $region21: #{tpu_custom_call.1} parent=1 // pred_fallthru
      _
    // Predicated region
    $region22: #{tpu_custom_call.1} parent=1 // pred_check
      _
    $region23: #{tpu_custom_call.1} parent=1 // pred_check_branch
      %81 = sbr.rel (0) target = $region25
    $region24: #{tpu_custom_call.1} parent=1 // pred_region
      %83 = vsyncadd [#allocation12], 0
      %s84 = sshll.u32 %s5, 4
      %s85 = int_to_ptr.hbm [resolvable:$true] %s84
      %s86 = sshll.u32 [#allocation11], 4
      %s87 = int_to_ptr.vmem [resolvable:$true] %s86
      %92 = dma.hbm_to_vmem [thread:$0]  %s85, 512, %s87, [#allocation12], 128, 128, 8
    $region25: #{tpu_custom_call.1} parent=1 // pred_fallthru
      _
    // Predicated region
    $region26: #{tpu_custom_call.1} parent=1 // pred_check
      _
    $region27: #{tpu_custom_call.1} parent=1 // pred_check_branch
      %94 = sbr.rel (0) target = $region29
    $region28: #{tpu_custom_call.1} parent=1 // pred_region
      _
    $region29: #{tpu_custom_call.1} parent=1 // pred_fallthru
      _
    // Predicated region
    $region30: #{tpu_custom_call.1} parent=1 // pred_check
      _
    $region31: #{tpu_custom_call.1} parent=1 // pred_check_branch
      %96 = sbr.rel (0) target = $region33
    $region32: #{tpu_custom_call.1} parent=1 // pred_region
      _
    $region33: #{tpu_custom_call.1} parent=1 // pred_fallthru
      _
    // Predicated region
    $region34: #{tpu_custom_call.1} parent=1 // pred_check
      _
    $region35: #{tpu_custom_call.1} parent=1 // pred_check_branch
      %98 = sbr.rel (0) target = $region37
    $region36: #{tpu_custom_call.1} parent=1 // pred_region
      _
    $region37: #{tpu_custom_call.1} parent=1 // pred_fallthru
      _
    // Predicated region
    $region38: #{tpu_custom_call.1} parent=1 // pred_check
      _
    $region39: #{tpu_custom_call.1} parent=1 // pred_check_branch
      %100 = sbr.rel (0) target = $region41
    $region40: #{tpu_custom_call.1} parent=1 // pred_region
      %102 = dma.done [#allocation3], 1024
    $region41: #{tpu_custom_call.1} parent=1 // pred_fallthru
      _
    // Predicated region
    $region42: #{tpu_custom_call.1} parent=1 // pred_check
      _
    $region43: #{tpu_custom_call.1} parent=1 // pred_check_branch
      %104 = sbr.rel (0) target = $region45
    $region44: #{tpu_custom_call.1} parent=1 // pred_region
      %106 = dma.done [#allocation6], 128
    $region45: #{tpu_custom_call.1} parent=1 // pred_fallthru
      _
    // Predicated region
    $region46: #{tpu_custom_call.1} parent=1 // pred_check
      _
    $region47: #{tpu_custom_call.1} parent=1 // pred_check_branch
      %108 = sbr.rel (0) target = $region49
    $region48: #{tpu_custom_call.1} parent=1 // pred_region
      %110 = dma.done [#allocation6], 128
    $region49: #{tpu_custom_call.1} parent=1 // pred_fallthru
      _
    // Predicated region
    $region50: #{tpu_custom_call.1} parent=1 // pred_check
      _
    $region51: #{tpu_custom_call.1} parent=1 // pred_check_branch
      %112 = sbr.rel (0) target = $region53
    $region52: #{tpu_custom_call.1} parent=1 // pred_region
      %114 = dma.done [#allocation9], 512
    $region53: #{tpu_custom_call.1} parent=1 // pred_fallthru
      _
    // Predicated region
    $region54: #{tpu_custom_call.1} parent=1 // pred_check
      _
    $region55: #{tpu_custom_call.1} parent=1 // pred_check_branch
      %116 = sbr.rel (0) target = $region57
    $region56: #{tpu_custom_call.1} parent=1 // pred_region
      %118 = dma.done [#allocation9], 512
    $region57: #{tpu_custom_call.1} parent=1 // pred_fallthru
      _
    // Predicated region
    $region58: #{tpu_custom_call.1} parent=1 // pred_check
      _
    $region59: #{tpu_custom_call.1} parent=1 // pred_check_branch
      %120 = sbr.rel (0) target = $region61
    $region60: #{tpu_custom_call.1} parent=1 // pred_region
      %122 = dma.done [#allocation12], 512
    $region61: #{tpu_custom_call.1} parent=1 // pred_fallthru
      _
    %v123 = vld [vmem:[#allocation2] sm:$0xff]
    %v124 = vld [vmem:[#allocation2 + $0x8] sm:$0xff]
    %v125 = vld [vmem:[#allocation2 + $0x10] sm:$0xff]
    %v126 = vld [vmem:[#allocation2 + $0x18] sm:$0xff]
    %v127 = vld [vmem:[#allocation2 + $0x20] sm:$0xff]
    %v128 = vld [vmem:[#allocation2 + $0x28] sm:$0xff]
    %v129 = vld [vmem:[#allocation2 + $0x30] sm:$0xff]
    %v130 = vld [vmem:[#allocation2 + $0x38] sm:$0xff]
    %v131 = vld [vmem:[#allocation7] sm:$0xff]
    %v132 = vld [vmem:[#allocation8] sm:$0xff]
    %v133 = vld [vmem:[#allocation8 + $0x8] sm:$0xff]
    %v134 = vld [vmem:[#allocation8 + $0x10] sm:$0xff]
    %v135 = vld [vmem:[#allocation8 + $0x18] sm:$0xff]
    %v136 = vld [vmem:[%s6] sm:$0x1]
    %v138 = vperm.slane %v136, 0
    %vm140 = vcmask 261120
    %v142 = vsel %vm140, %v131, 0
    %144 = vmatpush.msra.mxu0 0.0
    %145 = vmatpush.msra.mxu0 0.0
    %146 = vmatpush.msra.mxu0 0.0
    %147 = vmatpush.msra.mxu0 0.0
    %148 = vmatpush.msra.mxu0 0.0
    %149 = vmatpush.msra.mxu0 0.0
    %150 = vmatpush.msra.mxu0 0.0
    %151 = vmatpush.msra.mxu0 0.0
    %152 = vmatpush.msra.mxu0 0.0
    %153 = vmatpush.msra.mxu0 0.0
    %154 = vmatpush.msra.mxu0 0.0
    %155 = vmatpush.msra.mxu0 0.0
    %156 = vmatpush.msra.mxu0 %v135
    %157 = vmatpush.msra.mxu0 %v134
    %158 = vmatpush.msra.mxu0 %v133
    %159 = vmatpush.msra.mxu0 %v132
    %160 = vmatmul.f32.gmra.mxu0 %v142
    %v161 = vpop.f32.mrf.mxu0
    %v162 = vadd.f32 %v138, %v161
    %163 = vdwg.mxu0
    %v164 = vld [vmem:[#allocation10] sm:$0xff]
    %v165 = vld [vmem:[#allocation10 + $0x8] sm:$0xff]
    %v166 = vld [vmem:[#allocation10 + $0x10] sm:$0xff]
    %v167 = vld [vmem:[#allocation10 + $0x18] sm:$0xff]
    %v168 = vld [vmem:[%s7] sm:$0x1]
    %v170 = vperm.slane %v168, 0
    %v173 = vsel %vm140, %v123, 0
    %v176 = vsel %vm140, %v124, 0
    %v179 = vsel %vm140, %v125, 0
    %v182 = vsel %vm140, %v126, 0
    %v185 = vsel %vm140, %v127, 0
    %v188 = vsel %vm140, %v128, 0
    %v191 = vsel %vm140, %v129, 0
    %v194 = vsel %vm140, %v130, 0
    %196 = vmatpush.msra.mxu0 0.0
    %197 = vmatpush.msra.mxu0 0.0
    %198 = vmatpush.msra.mxu0 0.0
    %199 = vmatpush.msra.mxu0 0.0
    %200 = vmatpush.msra.mxu0 0.0
    %201 = vmatpush.msra.mxu0 0.0
    %202 = vmatpush.msra.mxu0 0.0
    %203 = vmatpush.msra.mxu0 0.0
    %204 = vmatpush.msra.mxu0 0.0
    %205 = vmatpush.msra.mxu0 0.0
    %206 = vmatpush.msra.mxu0 0.0
    %207 = vmatpush.msra.mxu0 0.0
    %208 = vmatpush.msra.mxu0 %v167
    %209 = vmatpush.msra.mxu0 %v166
    %210 = vmatpush.msra.mxu0 %v165
    %211 = vmatpush.msra.mxu0 %v164
    %212 = vmatmul.f32.gmra.mxu0 %v173
    %v213 = vpop.f32.mrf.mxu0
    %v214 = vadd.f32 %v170, %v213
    %215 = vmatmul.f32.gmra.mxu0 %v176
    %v216 = vpop.f32.mrf.mxu0
    %v217 = vadd.f32 %v170, %v216
    %218 = vmatmul.f32.gmra.mxu0 %v179
    %v219 = vpop.f32.mrf.mxu0
    %v220 = vadd.f32 %v170, %v219
    %221 = vmatmul.f32.gmra.mxu0 %v182
    %v222 = vpop.f32.mrf.mxu0
    %v223 = vadd.f32 %v170, %v222
    %224 = vmatmul.f32.gmra.mxu0 %v185
    %v225 = vpop.f32.mrf.mxu0
    %v226 = vadd.f32 %v170, %v225
    %227 = vmatmul.f32.gmra.mxu0 %v188
    %v228 = vpop.f32.mrf.mxu0
    %v229 = vadd.f32 %v170, %v228
    %230 = vmatmul.f32.gmra.mxu0 %v191
    %v231 = vpop.f32.mrf.mxu0
    %v232 = vadd.f32 %v170, %v231
    %233 = vmatmul.f32.gmra.mxu0 %v194
    %v234 = vpop.f32.mrf.mxu0
    %v235 = vadd.f32 %v170, %v234
    %236 = vdwg.mxu0
    %v237 = vld [vmem:[#allocation11] sm:$0xff]
    %v238 = vld [vmem:[#allocation11 + $0x8] sm:$0xff]
    %v239 = vld [vmem:[#allocation11 + $0x10] sm:$0xff]
    %v240 = vld [vmem:[#allocation11 + $0x18] sm:$0xff]
    %v241 = vld [vmem:[%s8] sm:$0x1]
    %v243 = vperm.slane %v241, 0
    %245 = vmatpush.msra.mxu0 0.0
    %246 = vmatpush.msra.mxu0 0.0
    %247 = vmatpush.msra.mxu0 0.0
    %248 = vmatpush.msra.mxu0 0.0
    %249 = vmatpush.msra.mxu0 0.0
    %250 = vmatpush.msra.mxu0 0.0
    %251 = vmatpush.msra.mxu0 0.0
    %252 = vmatpush.msra.mxu0 0.0
    %253 = vmatpush.msra.mxu0 0.0
    %254 = vmatpush.msra.mxu0 0.0
    %255 = vmatpush.msra.mxu0 0.0
    %256 = vmatpush.msra.mxu0 0.0
    %257 = vmatpush.msra.mxu0 %v240
    %258 = vmatpush.msra.mxu0 %v239
    %259 = vmatpush.msra.mxu0 %v238
    %260 = vmatpush.msra.mxu0 %v237
    %261 = vmatmul.f32.gmra.mxu0 %v173
    %v262 = vpop.f32.mrf.mxu0
    %v263 = vadd.f32 %v243, %v262
    %264 = vmatmul.f32.gmra.mxu0 %v176
    %v265 = vpop.f32.mrf.mxu0
    %v266 = vadd.f32 %v243, %v265
    %267 = vmatmul.f32.gmra.mxu0 %v179
    %v268 = vpop.f32.mrf.mxu0
    %v269 = vadd.f32 %v243, %v268
    %270 = vmatmul.f32.gmra.mxu0 %v182
    %v271 = vpop.f32.mrf.mxu0
    %v272 = vadd.f32 %v243, %v271
    %273 = vmatmul.f32.gmra.mxu0 %v185
    %v274 = vpop.f32.mrf.mxu0
    %v275 = vadd.f32 %v243, %v274
    %276 = vmatmul.f32.gmra.mxu0 %v188
    %v277 = vpop.f32.mrf.mxu0
    %v278 = vadd.f32 %v243, %v277
    %279 = vmatmul.f32.gmra.mxu0 %v191
    %v280 = vpop.f32.mrf.mxu0
    %v281 = vadd.f32 %v243, %v280
    %282 = vmatmul.f32.gmra.mxu0 %v194
    %v283 = vpop.f32.mrf.mxu0
    %v284 = vadd.f32 %v243, %v283
    %285 = vdwg.mxu0
    %v287 = vrot.slane %v162, 1
    %v288 = vrot.slane %v162, 2
    %v289 = vrot.slane %v162, 3
    %v290 = vrot.slane %v162, 4
    %v291 = vrot.slane %v162, 5
    %v292 = vrot.slane %v162, 6
    %v293 = vrot.slane %v162, 7
    %v294 = vperm.slane %v162, 0
    %v295 = vperm.slane %v287, 0
    %v296 = vperm.slane %v288, 0
    %v297 = vperm.slane %v289, 0
    %v298 = vperm.slane %v290, 0
    %v299 = vperm.slane %v291, 0
    %v300 = vperm.slane %v292, 0
    %v301 = vperm.slane %v293, 0
    %v310 = vmul.f32 %v294, %v214
    %v311 = vmul.f32 %v295, %v217
    %v312 = vmul.f32 %v296, %v220
    %v313 = vmul.f32 %v297, %v223
    %v314 = vmul.f32 %v298, %v226
    %v315 = vmul.f32 %v299, %v229
    %v316 = vmul.f32 %v300, %v232
    %v317 = vmul.f32 %v301, %v235
    %v318 = vsel %vm140, %v310, 0.0
    %319 = vadd.xlane.f32.xlu0 %v318
    %v320 = vpop.xlane.xlu0 %319
    %v321 = vsel %vm140, %v311, 0.0
    %322 = vadd.xlane.f32.xlu0 %v321
    %v323 = vpop.xlane.xlu0 %322
    %v324 = vsel %vm140, %v312, 0.0
    %325 = vadd.xlane.f32.xlu0 %v324
    %v326 = vpop.xlane.xlu0 %325
    %v327 = vsel %vm140, %v313, 0.0
    %328 = vadd.xlane.f32.xlu0 %v327
    %v329 = vpop.xlane.xlu0 %328
    %v330 = vsel %vm140, %v314, 0.0
    %331 = vadd.xlane.f32.xlu0 %v330
    %v332 = vpop.xlane.xlu0 %331
    %v333 = vsel %vm140, %v315, 0.0
    %334 = vadd.xlane.f32.xlu0 %v333
    %v335 = vpop.xlane.xlu0 %334
    %v336 = vsel %vm140, %v316, 0.0
    %337 = vadd.xlane.f32.xlu0 %v336
    %v338 = vpop.xlane.xlu0 %337
    %v339 = vsel %vm140, %v317, 0.0
    %340 = vadd.xlane.f32.xlu0 %v339
    %v341 = vpop.xlane.xlu0 %340
    %v342 = vld [vmem:[#allocation5] sm:$0xff]
    %v344 = vperm.slane %v342, 0
    %v345 = vlaneseq
    %v346 = vshrl.u32 %v345, 7
    %348 = vset.pattern.permute.xlu0 %v346
    %349 = vperm.xlu0 %348, %v344
    %v350 = vpop.permute.xlu0 %349
    %v351 = vperm.slane %v342, 1
    %v352 = vlaneseq
    %v353 = vshrl.u32 %v352, 7
    %355 = vset.pattern.permute.xlu0 %v353
    %356 = vperm.xlu0 %355, %v351
    %v357 = vpop.permute.xlu0 %356
    %v358 = vperm.slane %v342, 2
    %v359 = vlaneseq
    %v360 = vshrl.u32 %v359, 7
    %362 = vset.pattern.permute.xlu0 %v360
    %363 = vperm.xlu0 %362, %v358
    %v364 = vpop.permute.xlu0 %363
    %v365 = vperm.slane %v342, 3
    %v366 = vlaneseq
    %v367 = vshrl.u32 %v366, 7
    %369 = vset.pattern.permute.xlu0 %v367
    %370 = vperm.xlu0 %369, %v365
    %v371 = vpop.permute.xlu0 %370
    %v372 = vperm.slane %v342, 4
    %v373 = vlaneseq
    %v374 = vshrl.u32 %v373, 7
    %376 = vset.pattern.permute.xlu0 %v374
    %377 = vperm.xlu0 %376, %v372
    %v378 = vpop.permute.xlu0 %377
    %v379 = vperm.slane %v342, 5
    %v380 = vlaneseq
    %v381 = vshrl.u32 %v380, 7
    %383 = vset.pattern.permute.xlu0 %v381
    %384 = vperm.xlu0 %383, %v379
    %v385 = vpop.permute.xlu0 %384
    %v386 = vperm.slane %v342, 6
    %v387 = vlaneseq
    %v388 = vshrl.u32 %v387, 7
    %390 = vset.pattern.permute.xlu0 %v388
    %391 = vperm.xlu0 %390, %v386
    %v392 = vpop.permute.xlu0 %391
    %v393 = vperm.slane %v342, 7
    %v394 = vlaneseq
    %v395 = vshrl.u32 %v394, 7
    %397 = vset.pattern.permute.xlu0 %v395
    %398 = vperm.xlu0 %397, %v393
    %v399 = vpop.permute.xlu0 %398
    %v408 = vmul.f32 %v320, %v350
    %v409 = vmul.f32 %v323, %v357
    %v410 = vmul.f32 %v326, %v364
    %v411 = vmul.f32 %v329, %v371
    %v412 = vmul.f32 %v332, %v378
    %v413 = vmul.f32 %v335, %v385
    %v414 = vmul.f32 %v338, %v392
    %v415 = vmul.f32 %v341, %v399
    %v416 = vsub.f32 1.0, %v342
    %v418 = vperm.slane %v416, 0
    %v419 = vlaneseq
    %v420 = vshrl.u32 %v419, 7
    %422 = vset.pattern.permute.xlu0 %v420
    %423 = vperm.xlu0 %422, %v418
    %v424 = vpop.permute.xlu0 %423
    %v425 = vperm.slane %v416, 1
    %v426 = vlaneseq
    %v427 = vshrl.u32 %v426, 7
    %429 = vset.pattern.permute.xlu0 %v427
    %430 = vperm.xlu0 %429, %v425
    %v431 = vpop.permute.xlu0 %430
    %v432 = vperm.slane %v416, 2
    %v433 = vlaneseq
    %v434 = vshrl.u32 %v433, 7
    %436 = vset.pattern.permute.xlu0 %v434
    %437 = vperm.xlu0 %436, %v432
    %v438 = vpop.permute.xlu0 %437
    %v439 = vperm.slane %v416, 3
    %v440 = vlaneseq
    %v441 = vshrl.u32 %v440, 7
    %443 = vset.pattern.permute.xlu0 %v441
    %444 = vperm.xlu0 %443, %v439
    %v445 = vpop.permute.xlu0 %444
    %v446 = vperm.slane %v416, 4
    %v447 = vlaneseq
    %v448 = vshrl.u32 %v447, 7
    %450 = vset.pattern.permute.xlu0 %v448
    %451 = vperm.xlu0 %450, %v446
    %v452 = vpop.permute.xlu0 %451
    %v453 = vperm.slane %v416, 5
    %v454 = vlaneseq
    %v455 = vshrl.u32 %v454, 7
    %457 = vset.pattern.permute.xlu0 %v455
    %458 = vperm.xlu0 %457, %v453
    %v459 = vpop.permute.xlu0 %458
    %v460 = vperm.slane %v416, 6
    %v461 = vlaneseq
    %v462 = vshrl.u32 %v461, 7
    %464 = vset.pattern.permute.xlu0 %v462
    %465 = vperm.xlu0 %464, %v460
    %v466 = vpop.permute.xlu0 %465
    %v467 = vperm.slane %v416, 7
    %v468 = vlaneseq
    %v469 = vshrl.u32 %v468, 7
    %471 = vset.pattern.permute.xlu0 %v469
    %472 = vperm.xlu0 %471, %v467
    %v473 = vpop.permute.xlu0 %472
    %v482 = vmul.f32 %v320, %v424
    %v483 = vmul.f32 %v323, %v431
    %v484 = vmul.f32 %v326, %v438
    %v485 = vmul.f32 %v329, %v445
    %v486 = vmul.f32 %v332, %v452
    %v487 = vmul.f32 %v335, %v459
    %v488 = vmul.f32 %v338, %v466
    %v489 = vmul.f32 %v341, %v473
    %v490 = vmul.f32 %v482, -4.2949673e+09
    %v491 = vmul.f32 %v483, -4.2949673e+09
    %v492 = vmul.f32 %v484, -4.2949673e+09
    %v493 = vmul.f32 %v485, -4.2949673e+09
    %v494 = vmul.f32 %v486, -4.2949673e+09
    %v495 = vmul.f32 %v487, -4.2949673e+09
    %v496 = vmul.f32 %v488, -4.2949673e+09
    %v497 = vmul.f32 %v489, -4.2949673e+09
    %v498 = vadd.f32 %v408, %v490
    %v499 = vadd.f32 %v409, %v491
    %v500 = vadd.f32 %v410, %v492
    %v501 = vadd.f32 %v411, %v493
    %v502 = vadd.f32 %v412, %v494
    %v503 = vadd.f32 %v413, %v495
    %v504 = vadd.f32 %v414, %v496
    %v505 = vadd.f32 %v415, %v497
    %514 = vset.pattern.permute.xlu0 0
    %515 = vperm.xlu0 %514, %v498
    %v516 = vpop.permute.xlu0 %515
    %517 = vset.pattern.permute.xlu0 0
    %518 = vperm.xlu0 %517, %v499
    %v519 = vpop.permute.xlu0 %518
    %520 = vset.pattern.permute.xlu0 0
    %521 = vperm.xlu0 %520, %v500
    %v522 = vpop.permute.xlu0 %521
    %523 = vset.pattern.permute.xlu0 0
    %524 = vperm.xlu0 %523, %v501
    %v525 = vpop.permute.xlu0 %524
    %526 = vset.pattern.permute.xlu0 0
    %527 = vperm.xlu0 %526, %v502
    %v528 = vpop.permute.xlu0 %527
    %529 = vset.pattern.permute.xlu0 0
    %530 = vperm.xlu0 %529, %v503
    %v531 = vpop.permute.xlu0 %530
    %532 = vset.pattern.permute.xlu0 0
    %533 = vperm.xlu0 %532, %v504
    %v534 = vpop.permute.xlu0 %533
    %535 = vset.pattern.permute.xlu0 0
    %536 = vperm.xlu0 %535, %v505
    %v537 = vpop.permute.xlu0 %536
    %v538 = vlaneseq
    %v539 = vand.u32 %v538, 127
    %v540 = vperm.slane %v516, %v539
    %v541 = vperm.slane %v519, %v539
    %v542 = vperm.slane %v522, %v539
    %v543 = vperm.slane %v525, %v539
    %v544 = vperm.slane %v528, %v539
    %v545 = vperm.slane %v531, %v539
    %v546 = vperm.slane %v534, %v539
    %v547 = vperm.slane %v537, %v539
    %vm548 = vcmask 1041409
    %v549 = vsel %vm548, %v541, %v540
    %vm550 = vcmask 1042434
    %v551 = vsel %vm550, %v542, %v549
    %vm552 = vcmask 1043459
    %v553 = vsel %vm552, %v543, %v551
    %vm554 = vcmask 1044484
    %v555 = vsel %vm554, %v544, %v553
    %vm556 = vcmask 1045509
    %v557 = vsel %vm556, %v545, %v555
    %vm558 = vcmask 1046534
    %v559 = vsel %vm558, %v546, %v557
    %vm560 = vcmask 1047559
    %v561 = vsel %vm560, %v547, %v559
    %vm563 = vcmask 64512
    %v564 = vsel %vm563, %v561, -inf
    %565 = vmax.xlane.f32.xlu0 %v564
    %v566 = vpop.xlane.xlu0 %565
    %v568 = vperm.slane %v566, 0
    %v569 = vperm.slane %v566, 1
    %v570 = vperm.slane %v566, 2
    %v571 = vperm.slane %v566, 3
    %v572 = vperm.slane %v566, 4
    %v573 = vperm.slane %v566, 5
    %v574 = vperm.slane %v566, 6
    %v575 = vperm.slane %v566, 7
    %v584 = vsub.f32 %v498, %v568
    %v585 = vsub.f32 %v499, %v569
    %v586 = vsub.f32 %v500, %v570
    %v587 = vsub.f32 %v501, %v571
    %v588 = vsub.f32 %v502, %v572
    %v589 = vsub.f32 %v503, %v573
    %v590 = vsub.f32 %v504, %v574
    %v591 = vsub.f32 %v505, %v575
    %v592 = vmul.f32 %v584, 1.442695
    %v593 = vpow.pop %v592
    %v594 = vmul.f32 %v585, 1.442695
    %v595 = vpow.pop %v594
    %v596 = vmul.f32 %v586, 1.442695
    %v597 = vpow.pop %v596
    %v598 = vmul.f32 %v587, 1.442695
    %v599 = vpow.pop %v598
    %v600 = vmul.f32 %v588, 1.442695
    %v601 = vpow.pop %v600
    %v602 = vmul.f32 %v589, 1.442695
    %v603 = vpow.pop %v602
    %v604 = vmul.f32 %v590, 1.442695
    %v605 = vpow.pop %v604
    %v606 = vmul.f32 %v591, 1.442695
    %v607 = vpow.pop %v606
    %616 = vset.pattern.permute.xlu0 0
    %617 = vperm.xlu0 %616, %v593
    %v618 = vpop.permute.xlu0 %617
    %619 = vset.pattern.permute.xlu0 0
    %620 = vperm.xlu0 %619, %v595
    %v621 = vpop.permute.xlu0 %620
    %622 = vset.pattern.permute.xlu0 0
    %623 = vperm.xlu0 %622, %v597
    %v624 = vpop.permute.xlu0 %623
    %625 = vset.pattern.permute.xlu0 0
    %626 = vperm.xlu0 %625, %v599
    %v627 = vpop.permute.xlu0 %626
    %628 = vset.pattern.permute.xlu0 0
    %629 = vperm.xlu0 %628, %v601
    %v630 = vpop.permute.xlu0 %629
    %631 = vset.pattern.permute.xlu0 0
    %632 = vperm.xlu0 %631, %v603
    %v633 = vpop.permute.xlu0 %632
    %634 = vset.pattern.permute.xlu0 0
    %635 = vperm.xlu0 %634, %v605
    %v636 = vpop.permute.xlu0 %635
    %637 = vset.pattern.permute.xlu0 0
    %638 = vperm.xlu0 %637, %v607
    %v639 = vpop.permute.xlu0 %638
    %v640 = vperm.slane %v618, %v539
    %v641 = vperm.slane %v621, %v539
    %v642 = vperm.slane %v624, %v539
    %v643 = vperm.slane %v627, %v539
    %v644 = vperm.slane %v630, %v539
    %v645 = vperm.slane %v633, %v539
    %v646 = vperm.slane %v636, %v539
    %v647 = vperm.slane %v639, %v539
    %v648 = vsel %vm548, %v641, %v640
    %v649 = vsel %vm550, %v642, %v648
    %v650 = vsel %vm552, %v643, %v649
    %v651 = vsel %vm554, %v644, %v650
    %v652 = vsel %vm556, %v645, %v651
    %v653 = vsel %vm558, %v646, %v652
    %v654 = vsel %vm560, %v647, %v653
    %v656 = vsel %vm563, %v654, 0.0
    %657 = vadd.xlane.f32.xlu0 %v656
    %v658 = vpop.xlane.xlu0 %657
    %v660 = vperm.slane %v658, 0
    %v661 = vperm.slane %v658, 1
    %v662 = vperm.slane %v658, 2
    %v663 = vperm.slane %v658, 3
    %v664 = vperm.slane %v658, 4
    %v665 = vperm.slane %v658, 5
    %v666 = vperm.slane %v658, 6
    %v667 = vperm.slane %v658, 7
    %v676 = vrcp.pop %v660
    %v677 = vmul.f32 %v660, %v676
    %v678 = vsub.f32 1.0, %v677
    %v679 = vmul.f32 %v676, %v678
    %v680 = vadd.f32 %v676, %v679
    %vm681 = vweird.f32 %v660
    %vm682 = vweird.f32 %v676
    %vm683 = vmor %vm681, %vm682
    %v684 = vsel %vm683, %v676, %v680
    %v685 = vand.u32 2147483647, %v660
    %vm686 = vcmp.eq.f32.partialorder %v685, 8.507059e+37
    %v687 = vand.u32 %v660, 2147483648
    %v688 = vor.u32 1.1754944e-38, %v687
    %v689 = vsel %vm686, %v688, %v684
    %v690 = vmul.f32 %v593, %v689
    %v691 = vrcp.pop %v661
    %v692 = vmul.f32 %v661, %v691
    %v693 = vsub.f32 1.0, %v692
    %v694 = vmul.f32 %v691, %v693
    %v695 = vadd.f32 %v691, %v694
    %vm696 = vweird.f32 %v661
    %vm697 = vweird.f32 %v691
    %vm698 = vmor %vm696, %vm697
    %v699 = vsel %vm698, %v691, %v695
    %v700 = vand.u32 2147483647, %v661
    %vm701 = vcmp.eq.f32.partialorder %v700, 8.507059e+37
    %v702 = vand.u32 %v661, 2147483648
    %v703 = vor.u32 1.1754944e-38, %v702
    %v704 = vsel %vm701, %v703, %v699
    %v705 = vmul.f32 %v595, %v704
    %v706 = vrcp.pop %v662
    %v707 = vmul.f32 %v662, %v706
    %v708 = vsub.f32 1.0, %v707
    %v709 = vmul.f32 %v706, %v708
    %v710 = vadd.f32 %v706, %v709
    %vm711 = vweird.f32 %v662
    %vm712 = vweird.f32 %v706
    %vm713 = vmor %vm711, %vm712
    %v714 = vsel %vm713, %v706, %v710
    %v715 = vand.u32 2147483647, %v662
    %vm716 = vcmp.eq.f32.partialorder %v715, 8.507059e+37
    %v717 = vand.u32 %v662, 2147483648
    %v718 = vor.u32 1.1754944e-38, %v717
    %v719 = vsel %vm716, %v718, %v714
    %v720 = vmul.f32 %v597, %v719
    %v721 = vrcp.pop %v663
    %v722 = vmul.f32 %v663, %v721
    %v723 = vsub.f32 1.0, %v722
    %v724 = vmul.f32 %v721, %v723
    %v725 = vadd.f32 %v721, %v724
    %vm726 = vweird.f32 %v663
    %vm727 = vweird.f32 %v721
    %vm728 = vmor %vm726, %vm727
    %v729 = vsel %vm728, %v721, %v725
    %v730 = vand.u32 2147483647, %v663
    %vm731 = vcmp.eq.f32.partialorder %v730, 8.507059e+37
    %v732 = vand.u32 %v663, 2147483648
    %v733 = vor.u32 1.1754944e-38, %v732
    %v734 = vsel %vm731, %v733, %v729
    %v735 = vmul.f32 %v599, %v734
    %v736 = vrcp.pop %v664
    %v737 = vmul.f32 %v664, %v736
    %v738 = vsub.f32 1.0, %v737
    %v739 = vmul.f32 %v736, %v738
    %v740 = vadd.f32 %v736, %v739
    %vm741 = vweird.f32 %v664
    %vm742 = vweird.f32 %v736
    %vm743 = vmor %vm741, %vm742
    %v744 = vsel %vm743, %v736, %v740
    %v745 = vand.u32 2147483647, %v664
    %vm746 = vcmp.eq.f32.partialorder %v745, 8.507059e+37
    %v747 = vand.u32 %v664, 2147483648
    %v748 = vor.u32 1.1754944e-38, %v747
    %v749 = vsel %vm746, %v748, %v744
    %v750 = vmul.f32 %v601, %v749
    %v751 = vrcp.pop %v665
    %v752 = vmul.f32 %v665, %v751
    %v753 = vsub.f32 1.0, %v752
    %v754 = vmul.f32 %v751, %v753
    %v755 = vadd.f32 %v751, %v754
    %vm756 = vweird.f32 %v665
    %vm757 = vweird.f32 %v751
    %vm758 = vmor %vm756, %vm757
    %v759 = vsel %vm758, %v751, %v755
    %v760 = vand.u32 2147483647, %v665
    %vm761 = vcmp.eq.f32.partialorder %v760, 8.507059e+37
    %v762 = vand.u32 %v665, 2147483648
    %v763 = vor.u32 1.1754944e-38, %v762
    %v764 = vsel %vm761, %v763, %v759
    %v765 = vmul.f32 %v603, %v764
    %v766 = vrcp.pop %v666
    %v767 = vmul.f32 %v666, %v766
    %v768 = vsub.f32 1.0, %v767
    %v769 = vmul.f32 %v766, %v768
    %v770 = vadd.f32 %v766, %v769
    %vm771 = vweird.f32 %v666
    %vm772 = vweird.f32 %v766
    %vm773 = vmor %vm771, %vm772
    %v774 = vsel %vm773, %v766, %v770
    %v775 = vand.u32 2147483647, %v666
    %vm776 = vcmp.eq.f32.partialorder %v775, 8.507059e+37
    %v777 = vand.u32 %v666, 2147483648
    %v778 = vor.u32 1.1754944e-38, %v777
    %v779 = vsel %vm776, %v778, %v774
    %v780 = vmul.f32 %v605, %v779
    %v781 = vrcp.pop %v667
    %v782 = vmul.f32 %v667, %v781
    %v783 = vsub.f32 1.0, %v782
    %v784 = vmul.f32 %v781, %v783
    %v785 = vadd.f32 %v781, %v784
    %vm786 = vweird.f32 %v667
    %vm787 = vweird.f32 %v781
    %vm788 = vmor %vm786, %vm787
    %v789 = vsel %vm788, %v781, %v785
    %v790 = vand.u32 2147483647, %v667
    %vm791 = vcmp.eq.f32.partialorder %v790, 8.507059e+37
    %v792 = vand.u32 %v667, 2147483648
    %v793 = vor.u32 1.1754944e-38, %v792
    %v794 = vsel %vm791, %v793, %v789
    %v795 = vmul.f32 %v607, %v794
    %797 = vset.pattern.permute.xlu0 0
    %798 = vperm.xlu0 %797, %v690
    %v799 = vpop.permute.xlu0 %798
    %802 = vset.pattern.permute.xlu0 0
    %803 = vperm.xlu0 %802, %v705
    %v804 = vpop.permute.xlu0 %803
    %807 = vset.pattern.permute.xlu0 0
    %808 = vperm.xlu0 %807, %v720
    %v809 = vpop.permute.xlu0 %808
    %812 = vset.pattern.permute.xlu0 0
    %813 = vperm.xlu0 %812, %v735
    %v814 = vpop.permute.xlu0 %813
    %817 = vset.pattern.permute.xlu0 0
    %818 = vperm.xlu0 %817, %v750
    %v819 = vpop.permute.xlu0 %818
    %822 = vset.pattern.permute.xlu0 0
    %823 = vperm.xlu0 %822, %v765
    %v824 = vpop.permute.xlu0 %823
    %827 = vset.pattern.permute.xlu0 0
    %828 = vperm.xlu0 %827, %v780
    %v829 = vpop.permute.xlu0 %828
    %832 = vset.pattern.permute.xlu0 0
    %833 = vperm.xlu0 %832, %v795
    %v834 = vpop.permute.xlu0 %833
    %v836 = vmul.f32 %v799, %v263
    %v837 = vmul.f32 %v804, %v266
    %v838 = vmul.f32 %v809, %v269
    %v839 = vmul.f32 %v814, %v272
    %v840 = vmul.f32 %v819, %v275
    %v841 = vmul.f32 %v824, %v278
    %v842 = vmul.f32 %v829, %v281
    %v843 = vmul.f32 %v834, %v284
    %v844 = vsel %vm140, %v836, 0.0
    %v845 = vrot.slane %v844, 4
    %v846 = vadd.f32 %v844, %v845
    %v847 = vrot.slane %v846, 2
    %v848 = vadd.f32 %v846, %v847
    %v849 = vrot.slane %v848, 1
    %v850 = vadd.f32 %v848, %v849
    %v851 = vsel %vm140, %v837, 0.0
    %v852 = vrot.slane %v851, 4
    %v853 = vadd.f32 %v851, %v852
    %v854 = vrot.slane %v853, 2
    %v855 = vadd.f32 %v853, %v854
    %v856 = vrot.slane %v855, 1
    %v857 = vadd.f32 %v855, %v856
    %v858 = vsel %vm140, %v838, 0.0
    %v859 = vrot.slane %v858, 4
    %v860 = vadd.f32 %v858, %v859
    %v861 = vrot.slane %v860, 2
    %v862 = vadd.f32 %v860, %v861
    %v863 = vrot.slane %v862, 1
    %v864 = vadd.f32 %v862, %v863
    %v865 = vsel %vm140, %v839, 0.0
    %v866 = vrot.slane %v865, 4
    %v867 = vadd.f32 %v865, %v866
    %v868 = vrot.slane %v867, 2
    %v869 = vadd.f32 %v867, %v868
    %v870 = vrot.slane %v869, 1
    %v871 = vadd.f32 %v869, %v870
    %v872 = vsel %vm140, %v840, 0.0
    %v873 = vrot.slane %v872, 4
    %v874 = vadd.f32 %v872, %v873
    %v875 = vrot.slane %v874, 2
    %v876 = vadd.f32 %v874, %v875
    %v877 = vrot.slane %v876, 1
    %v878 = vadd.f32 %v876, %v877
    %v879 = vsel %vm140, %v841, 0.0
    %v880 = vrot.slane %v879, 4
    %v881 = vadd.f32 %v879, %v880
    %v882 = vrot.slane %v881, 2
    %v883 = vadd.f32 %v881, %v882
    %v884 = vrot.slane %v883, 1
    %v885 = vadd.f32 %v883, %v884
    %v886 = vsel %vm140, %v842, 0.0
    %v887 = vrot.slane %v886, 4
    %v888 = vadd.f32 %v886, %v887
    %v889 = vrot.slane %v888, 2
    %v890 = vadd.f32 %v888, %v889
    %v891 = vrot.slane %v890, 1
    %v892 = vadd.f32 %v890, %v891
    %v893 = vsel %vm140, %v843, 0.0
    %v894 = vrot.slane %v893, 4
    %v895 = vadd.f32 %v893, %v894
    %v896 = vrot.slane %v895, 2
    %v897 = vadd.f32 %v895, %v896
    %v898 = vrot.slane %v897, 1
    %v899 = vadd.f32 %v897, %v898
    %v908 = vsel %vm548, %v857, %v850
    %v909 = vsel %vm550, %v864, %v908
    %v910 = vsel %vm552, %v871, %v909
    %v911 = vsel %vm554, %v878, %v910
    %v912 = vsel %vm556, %v885, %v911
    %v913 = vsel %vm558, %v892, %v912
    %v914 = vsel %vm560, %v899, %v913
    %916 = vst.msk [vmem:[#allocation13] sm:$0xff] %vm140, %v914
    // Predicated region
    $region62: #{tpu_custom_call.1} parent=1 // pred_check
      _
    $region63: #{tpu_custom_call.1} parent=1 // pred_check_branch
      %918 = sbr.rel (0) target = $region65
    $region64: #{tpu_custom_call.1} parent=1 // pred_region
      %920 = vsyncadd [#allocation4], 0
      %s922 = sshll.u32 [#allocation13], 4
      %s923 = int_to_ptr.vmem [resolvable:$true] %s922
      %s924 = sshll.u32 %s9, 4
      %s925 = int_to_ptr.hbm [resolvable:$true] %s924
      %927 = dma.vmem_to_hbm [thread:$0]  %s923, 128, %s925, [#allocation4]
    $region65: #{tpu_custom_call.1} parent=1 // pred_fallthru
      _
    // Predicated region
    $region66: #{tpu_custom_call.1} parent=1 // pred_check
      _
    $region67: #{tpu_custom_call.1} parent=1 // pred_check_branch
      %929 = sbr.rel (0) target = $region69
    $region68: #{tpu_custom_call.1} parent=1 // pred_region
      %931 = dma.done [#allocation4], 128
    $region69: #{tpu_custom_call.1} parent=1 // pred_fallthru
      _
    %932 = vsyncpa [#allocation3], 1
    %933 = vsyncpa [#allocation6], 1
    %934 = vsyncpa [#allocation9], 1
    %935 = vsyncpa [#allocation12], 1
    %936 = vsyncpa [#allocation4], 1

</llo_original>
